<compile_context>
chip_gen: v7x
topology: tpu7x:2x2x1
jax: 0.10.0
libtpu: 0.0.40
codegen_flags: <defaults>
</compile_context>

<pallas_src>
import functools

import jax
import jax.numpy as jnp
from jax.experimental import pallas as pl
from jax.experimental.pallas import tpu as pltpu


def _round_up(a, b):
    return ((a + b - 1) // b) * b


def _vmem_capacity_bytes():
    """Physical VMEM of the current generation (conservative fallback: v7x)."""
    try:
        info = pltpu.get_tpu_info()
        cap = getattr(info, "vmem_capacity_bytes", None)
        if cap:
            return int(cap)
    except Exception:
        pass
    return 64 * 1024 * 1024


def _ffn_kernel(x_ref, w12_ref, wo_ref, o_ref, acc_ref, *, ti):
    """One (M-tile, I-tile) step of the fused SwiGLU FFN.

    x_ref  : (tm, H)     activation tile (resident across the I axis)
    w12_ref: (H, 2*ti)   fused [W1^T | W2^T] I-tile, MXU-native (K, N) layout
    wo_ref : (ti, H)     Wo^T I-tile, MXU-native (K, N) layout
    o_ref  : (tm, H)     output tile (resident across the I axis)
    acc_ref: (tm, H)     f32 accumulator scratch
    """
    j = pl.program_id(1)
    x = x_ref[...]

    # Single fused up-projection on the MXU: (tm, H) @ (H, 2*ti), f32 acc.
    o12 = jnp.dot(x, w12_ref[...], preferred_element_type=jnp.float32)
    o1 = o12[:, :ti]          # ti is 128-aligned -> lane-tile-aligned slices
    o2 = o12[:, ti:]

    # SwiGLU gate in f32 on the VPU/EUP: o1 * (o2 * sigmoid(o2)).
    inter = o1 * (o2 * jax.nn.sigmoid(o2))

    # Partial down-projection for this I-tile, accumulated in f32.
    # (inter is cast to the operand dtype; lossy only on the bf16 path.)
    partial = jnp.dot(inter.astype(wo_ref.dtype), wo_ref[...],
                      preferred_element_type=jnp.float32)

    @pl.when(j == 0)
    def _():
        acc_ref[...] = partial          # direct store: no zero-fill + add

    @pl.when(j > 0)
    def _():
        acc_ref[...] += partial

    @pl.when(j == pl.num_programs(1) - 1)
    def _():
        o_ref[...] = acc_ref[...].astype(o_ref.dtype)


@functools.partial(jax.jit, static_argnames=("tm", "ti", "compute_dtype"))
def ndl_ffn(x, w1, w2, wo, *, tm=512, ti=512, compute_dtype=jnp.bfloat16):
    """Fused SwiGLU FFN:  ((x @ W1^T) * silu(x @ W2^T)) @ Wo^T.

    x : (B, S, H)
    w1, w2 : (I, H)   PyTorch nn.Linear (out_features, in_features) layout
    wo : (H, I)       PyTorch nn.Linear layout
    compute_dtype : matmul-operand dtype (bf16 production default); pass None
      to keep the input dtype (exact f32 path).  Output dtype == x.dtype.
    """
    B, S, H = x.shape
    I = w1.shape[0]
    M = B * S
    out_dtype = x.dtype                               # capture BEFORE any cast

    if compute_dtype is not None:
        x = x.astype(compute_dtype)
        w1 = w1.astype(compute_dtype)
        w2 = w2.astype(compute_dtype)
        wo = wo.astype(compute_dtype)
    op_bytes = jnp.dtype(x.dtype).itemsize
    out_bytes = jnp.dtype(out_dtype).itemsize

    # ---- tile selection (VMEM-aware; v7x=64 MiB, v5e/v6e=128 MiB) ----------
    tm_eff = min(_round_up(tm, 8), _round_up(M, 8))
    ti_eff = min(max(128, (ti // 128) * 128), _round_up(I, 128))

    vmem_cap = _vmem_capacity_bytes()
    budget = int(0.80 * vmem_cap)

    def footprint(tm_, ti_):
        return (2 * tm_ * H * op_bytes                 # x (double-buffered)
                + 2 * H * (2 * ti_) * op_bytes         # fused [W1|W2]^T tile
                + 2 * ti_ * H * op_bytes               # Wo^T tile
                + 2 * tm_ * H * out_bytes              # output
                + tm_ * H * 4                          # f32 accumulator
                + tm_ * (3 * ti_) * 4)                 # o12 / inter temporaries

    # Shrink the I tile first (only per-step footprint changes, total weight
    # traffic is fixed at 3*I*H per M-tile), then the M tile if still over.
    while footprint(tm_eff, ti_eff) > budget and ti_eff > 128:
        ti_eff = max(128, ti_eff // 2)
    while footprint(tm_eff, ti_eff) > budget and tm_eff > 8:
        tm_eff = max(8, _round_up(tm_eff // 2, 8))

    m_pad = _round_up(M, tm_eff)
    I_pad = _round_up(I, ti_eff)
    n_i = I_pad // ti_eff

    # ---- weight packing: transpose to (K, N), zero-pad I, fuse W1|W2 -------
    # Zero-padded columns of W1^T/W2^T give inter==0; zero rows of Wo^T add 0.
    # TODO(synk): in production pre-pack once and store in the param tree
    # instead of re-packing inside every call.
    w1t = jnp.zeros((H, I_pad), x.dtype).at[:, :I].set(w1.T)
    w2t = jnp.zeros((H, I_pad), x.dtype).at[:, :I].set(w2.T)
    w12 = jnp.stack([w1t.reshape(H, n_i, ti_eff),
                     w2t.reshape(H, n_i, ti_eff)],
                    axis=2).reshape(H, 2 * I_pad)
    wot = jnp.zeros((I_pad, H), x.dtype).at[:I, :].set(wo.T)

    x2d = x.reshape(M, H)
    if m_pad != M:
        x2d = jnp.pad(x2d, ((0, m_pad - M), (0, 0)))

    grid = (m_pad // tm_eff, n_i)
    # TODO(synk): on v7x, single-M-tile decode shapes leave the second
    # TensorCore idle; splitting the I axis across cores with a cross-core
    # reduction would recover that — not needed for these shapes.

    vmem_limit = int(min(max(int(1.25 * footprint(tm_eff, ti_eff)),
                             32 * 1024 * 1024),
                         int(0.90 * vmem_cap)))

    out2d = pl.pallas_call(
        functools.partial(_ffn_kernel, ti=ti_eff),
        out_shape=jax.ShapeDtypeStruct((m_pad, H), out_dtype),
        grid_spec=pltpu.PrefetchScalarGridSpec(
            num_scalar_prefetch=0,
            grid=grid,
            in_specs=[
                pl.BlockSpec((tm_eff, H), lambda i, j: (i, 0)),       # x tile
                pl.BlockSpec((H, 2 * ti_eff), lambda i, j: (0, j)),   # [W1|W2]^T
                pl.BlockSpec((ti_eff, H), lambda i, j: (j, 0)),       # Wo^T
            ],
            out_specs=pl.BlockSpec((tm_eff, H), lambda i, j: (i, 0)),
            scratch_shapes=[pltpu.VMEM((tm_eff, H), jnp.float32)],
        ),
        compiler_params=pltpu.CompilerParams(
            dimension_semantics=("parallel", "arbitrary"),
            vmem_limit_bytes=vmem_limit,
        ),
    )(x2d, w12, wot)

    if m_pad != M:
        out2d = out2d[:M]
    return out2d.reshape(B, S, H)


def ndl_ffn_ref(x, w1, w2, wo):
    """Pure-JAX reference matching the PyTorch forward (high-precision)."""
    o1 = jnp.einsum("bsh,ih->bsi", x, w1, precision="highest")
    o2 = jnp.einsum("bsh,ih->bsi", x, w2, precision="highest")
    inter = o1 * (o2 * jax.nn.sigmoid(o2))
    return jnp.einsum("bsi,hi->bsh", inter, wo, precision="highest")


if __name__ == "__main__":
    key = jax.random.PRNGKey(0)

    # --- test 1: small config consistent with the module (hidden=32, inter=64),
    #             exact f32 compute path.
    B, S, H, I = 2, 8, 32, 64
    kx, k1, k2, k3, k4 = jax.random.split(key, 5)
    x = jax.random.normal(kx, (B, S, H), dtype=jnp.float32)
    w1 = 0.1 * jax.random.normal(k1, (I, H), dtype=jnp.float32)   # ffn1_proj
    w2 = 0.1 * jax.random.normal(k2, (I, H), dtype=jnp.float32)   # ffn2_proj
    wo = 0.1 * jax.random.normal(k3, (H, I), dtype=jnp.float32)   # o_proj

    out = jax.block_until_ready(ndl_ffn(x, w1, w2, wo, compute_dtype=None))
    ref = ndl_ffn_ref(x, w1, w2, wo)
    assert out.shape == (B, S, H)
    assert out.dtype == x.dtype
    assert jnp.allclose(out, ref, atol=2e-3, rtol=2e-2), "mismatch vs reference"

    # --- test 2: exercises the I-axis accumulator (2 I-tiles) and M padding.
    B2, S2, H2, I2 = 2, 9, 32, 256
    kx2, k12, k22, k32 = jax.random.split(k4, 4)
    x2 = jax.random.normal(kx2, (B2, S2, H2), dtype=jnp.float32)
    w12_ = 0.1 * jax.random.normal(k12, (I2, H2), dtype=jnp.float32)
    w22_ = 0.1 * jax.random.normal(k22, (I2, H2), dtype=jnp.float32)
    wo2_ = 0.1 * jax.random.normal(k32, (H2, I2), dtype=jnp.float32)

    out2 = jax.block_until_ready(
        ndl_ffn(x2, w12_, w22_, wo2_, ti=128, compute_dtype=None))
    ref2 = ndl_ffn_ref(x2, w12_, w22_, wo2_)
    assert out2.shape == (B2, S2, H2)
    assert jnp.allclose(out2, ref2, atol=2e-3, rtol=2e-2), "mismatch (tiled I)"

    # --- test 3: production bf16-compute default path (loose tolerance).
    B3, S3, H3, I3 = 1, 64, 128, 512
    kx3, k13, k23, k33 = jax.random.split(jax.random.PRNGKey(1), 4)
    x3 = jax.random.normal(kx3, (B3, S3, H3), dtype=jnp.float32)
    w13 = 0.05 * jax.random.normal(k13, (I3, H3), dtype=jnp.float32)
    w23 = 0.05 * jax.random.normal(k23, (I3, H3), dtype=jnp.float32)
    wo3 = 0.05 * jax.random.normal(k33, (H3, I3), dtype=jnp.float32)

    out3 = jax.block_until_ready(ndl_ffn(x3, w13, w23, wo3))  # bf16 compute
    ref3 = ndl_ffn_ref(x3, w13, w23, wo3)
    assert out3.shape == (B3, S3, H3)
    assert out3.dtype == x3.dtype          # output cast back to input dtype
    assert bool(jnp.all(jnp.isfinite(out3)))
    assert jnp.allclose(out3, ref3, atol=3e-2, rtol=5e-2), "mismatch (bf16 path)"

    print("KERNEL_OK")
</pallas_src>

<mosaic_0001>
module attributes {stable_mosaic.version = 11 : i64} {
  func.func @_ffn_kernel(%arg0: i32, %arg1: i32, %arg2: memref<16x32xf32, #tpu.memory_space<vmem>>, %arg3: memref<32x256xf32, #tpu.memory_space<vmem>>, %arg4: memref<128x32xf32, #tpu.memory_space<vmem>>, %arg5: memref<16x32xf32, #tpu.memory_space<vmem>>, %arg6: memref<16x32xf32, #tpu.memory_space<vmem>>) attributes {dimension_semantics = [#tpu.dimension_semantics<parallel>, #tpu.dimension_semantics<arbitrary>], iteration_bounds = array<i64: 1, 1>, scalar_prefetch = 0 : i64, scratch_operands = 1 : i64, tpu.core_type = #tpu.core_type<tc>, window_params = [{transform_indices = @transform_0, window_bounds = array<i64: 16, 32>}, {transform_indices = @transform_1, window_bounds = array<i64: 32, 256>}, {transform_indices = @transform_2, window_bounds = array<i64: 128, 32>}, {transform_indices = @transform_3, window_bounds = array<i64: 16, 32>}]} {
    %c0 = arith.constant 0 : index
    %c0_0 = arith.constant 0 : index
    %0 = vector.load %arg2[%c0, %c0_0] : memref<16x32xf32, #tpu.memory_space<vmem>>, vector<16x32xf32>
    %c0_1 = arith.constant 0 : index
    %c0_2 = arith.constant 0 : index
    %1 = vector.load %arg3[%c0_1, %c0_2] : memref<32x256xf32, #tpu.memory_space<vmem>>, vector<32x256xf32>
    %cst = arith.constant dense<0.000000e+00> : vector<16x256xf32>
    %2 = tpu.matmul %0, %1, %cst {dimension_numbers = #tpu.dot_dimension_numbers<[1], [0], [0], [1], [0, 0, 1, 1], [], []>} : vector<16x32xf32>, vector<32x256xf32>, vector<16x256xf32> -> vector<16x256xf32>
    %3 = vector.extract_strided_slice %2 {offsets = [0, 0], sizes = [16, 128], strides = [1, 1]} : vector<16x256xf32> to vector<16x128xf32>
    %4 = vector.extract_strided_slice %2 {offsets = [0, 128], sizes = [16, 128], strides = [1, 1]} : vector<16x256xf32> to vector<16x128xf32>
    %5 = arith.negf %4 : vector<16x128xf32>
    %6 = math.exp %5 : vector<16x128xf32>
    %cst_3 = arith.constant 1.000000e+00 : f32
    %7 = vector.broadcast %cst_3 : f32 to vector<16x128xf32>
    %8 = arith.addf %7, %6 : vector<16x128xf32>
    %9 = arith.divf %7, %8 : vector<16x128xf32>
    %10 = arith.mulf %4, %9 : vector<16x128xf32>
    %11 = arith.mulf %3, %10 : vector<16x128xf32>
    %c0_4 = arith.constant 0 : index
    %c0_5 = arith.constant 0 : index
    %12 = vector.load %arg4[%c0_4, %c0_5] : memref<128x32xf32, #tpu.memory_space<vmem>>, vector<128x32xf32>
    %cst_6 = arith.constant dense<0.000000e+00> : vector<16x32xf32>
    %13 = tpu.matmul %11, %12, %cst_6 {dimension_numbers = #tpu.dot_dimension_numbers<[1], [0], [0], [1], [0, 0, 1, 1], [], []>} : vector<16x128xf32>, vector<128x32xf32>, vector<16x32xf32> -> vector<16x32xf32>
    %c0_i32 = arith.constant 0 : i32
    %14 = arith.cmpi eq, %arg1, %c0_i32 : i32
    %15 = arith.extui %14 : i1 to i32
    %c0_i32_7 = arith.constant 0 : i32
    %16 = arith.cmpi ne, %15, %c0_i32_7 : i32
    scf.if %16 {
      %c0_12 = arith.constant 0 : index
      %c0_13 = arith.constant 0 : index
      %23 = vector.load %arg6[%c0_12, %c0_13] : memref<16x32xf32, #tpu.memory_space<vmem>>, vector<16x32xf32>
      tpu.vector_store %arg6[%c0_12, %c0_13], %13 {strides = array<i32>} : memref<16x32xf32, #tpu.memory_space<vmem>>, vector<16x32xf32>,
    } else {
    }
    %c0_i32_8 = arith.constant 0 : i32
    %17 = arith.cmpi sgt, %arg1, %c0_i32_8 : i32
    %18 = arith.extui %17 : i1 to i32
    %c0_i32_9 = arith.constant 0 : i32
    %19 = arith.cmpi ne, %18, %c0_i32_9 : i32
    scf.if %19 {
      %c0_12 = arith.constant 0 : index
      %c0_13 = arith.constant 0 : index
      %23 = vector.load %arg6[%c0_12, %c0_13] : memref<16x32xf32, #tpu.memory_space<vmem>>, vector<16x32xf32>
      %24 = arith.addf %23, %13 : vector<16x32xf32>
      %c0_14 = arith.constant 0 : index
      %c0_15 = arith.constant 0 : index
      %25 = vector.load %arg6[%c0_14, %c0_15] : memref<16x32xf32, #tpu.memory_space<vmem>>, vector<16x32xf32>
      tpu.vector_store %arg6[%c0_14, %c0_15], %24 {strides = array<i32>} : memref<16x32xf32, #tpu.memory_space<vmem>>, vector<16x32xf32>,
    } else {
    }
    %c0_i32_10 = arith.constant 0 : i32
    %20 = arith.cmpi eq, %arg1, %c0_i32_10 : i32
    %21 = arith.extui %20 : i1 to i32
    %c0_i32_11 = arith.constant 0 : i32
    %22 = arith.cmpi ne, %21, %c0_i32_11 : i32
    scf.if %22 {
      %c0_12 = arith.constant 0 : index
      %c0_13 = arith.constant 0 : index
      %23 = vector.load %arg6[%c0_12, %c0_13] : memref<16x32xf32, #tpu.memory_space<vmem>>, vector<16x32xf32>
      %c0_14 = arith.constant 0 : index
      %c0_15 = arith.constant 0 : index
      %24 = vector.load %arg5[%c0_14, %c0_15] : memref<16x32xf32, #tpu.memory_space<vmem>>, vector<16x32xf32>
      tpu.vector_store %arg5[%c0_14, %c0_15], %23 {strides = array<i32>} : memref<16x32xf32, #tpu.memory_space<vmem>>, vector<16x32xf32>,
    } else {
    }
    return
  }
  func.func @transform_0(%arg0: i32, %arg1: i32) -> (i32, i32) {
    %c0_i32 = arith.constant 0 : i32
    %c0_i32_0 = arith.constant 0 : i32
    return %arg0, %c0_i32 : i32, i32
  }
  func.func @transform_1(%arg0: i32, %arg1: i32) -> (i32, i32) {
    %c0_i32 = arith.constant 0 : i32
    %c0_i32_0 = arith.constant 0 : i32
    return %c0_i32, %arg1 : i32, i32
  }
  func.func @transform_2(%arg0: i32, %arg1: i32) -> (i32, i32) {
    %c0_i32 = arith.constant 0 : i32
    %c0_i32_0 = arith.constant 0 : i32
    return %arg1, %c0_i32 : i32, i32
  }
  func.func @transform_3(%arg0: i32, %arg1: i32) -> (i32, i32) {
    %c0_i32 = arith.constant 0 : i32
    %c0_i32_0 = arith.constant 0 : i32
    return %arg0, %c0_i32 : i32, i32
  }
}

</mosaic_0001>

<llo_original>
// kernel: ndl_ffn.1
$region0: #{ndl_ffn.1}
  #allocation0 [shape = 'u32[]', space=smem, size = 0x4, offset = 0x4, fixed_abs, tag = 'smem constant byte address 0x4 - core index']
  #allocation1 [shape = 'u32[144,128]{1,0:T(1,128)}', space=vmem, size = 0x12000, scoped, tag = 'internal scratch']
  #allocation2 [shape = 'f32[16,32]{1,0:T(8,128)}', space=vmem, size = 0x2000, scoped, tag = 'scratch operand']
  %s0 = inlined_call_operand.vmem [shape: f32[16,32], index: 0, kind: input, shape index: {}]
  %s1 = inlined_call_operand.vmem [shape: f32[32,256], index: 1, kind: input, shape index: {}]
  %s2 = inlined_call_operand.vmem [shape: f32[128,32], index: 2, kind: input, shape index: {}]
  %s3 = inlined_call_operand.hbm [shape: f32[16,32], index: 3, kind: output, shape index: {}]
  %s4 = sld [smem:[#allocation0]]
  $region34: #{ndl_ffn.1} parent=0
    _
  %s6 = ssub.s32 1, %s4
  %s7 = scalar_select 0, %s6, %s4
  $region1: #{ndl_ffn.1} parent=0
    #allocation3 [shape = 'u8[8192]{0}', space=vmem, size = 0x2000, scoped, tag = 'output window, operand 0, single buffered']
    #allocation4 [shape = 's32[1]{0}', space=sflag, size = 0x4, scoped, tag = 'scoped memory for ndl_ffn.1']
    %8 = vsyncpa [#allocation4], 0
    // Predicated region
    $region2: #{ndl_ffn.1} parent=1 // pred_check
      _
    $region3: #{ndl_ffn.1} parent=1 // pred_check_branch
      %10 = sbr.rel (0) target = $region5
    $region4: #{ndl_ffn.1} parent=1 // pred_region
      _
    $region5: #{ndl_ffn.1} parent=1 // pred_fallthru
      _
    // Predicated region
    $region6: #{ndl_ffn.1} parent=1 // pred_check
      _
    $region7: #{ndl_ffn.1} parent=1 // pred_check_branch
      %12 = sbr.rel (0) target = $region9
    $region8: #{ndl_ffn.1} parent=1 // pred_region
      _
    $region9: #{ndl_ffn.1} parent=1 // pred_fallthru
      _
    // Predicated region
    $region10: #{ndl_ffn.1} parent=1 // pred_check
      _
    $region11: #{ndl_ffn.1} parent=1 // pred_check_branch
      %14 = sbr.rel (0) target = $region13
    $region12: #{ndl_ffn.1} parent=1 // pred_region
      _
    $region13: #{ndl_ffn.1} parent=1 // pred_fallthru
      _
    %v15 = vld [vmem:[%s0] sm:$0xff]
    %v16 = vld [vmem:[%s0 + $0x8] sm:$0xff]
    %v17 = vld [vmem:[%s1] sm:$0xff]
    %v18 = vld [vmem:[%s1 + $0x8] sm:$0xff]
    %v19 = vld [vmem:[%s1 + $0x10] sm:$0xff]
    %v20 = vld [vmem:[%s1 + $0x18] sm:$0xff]
    %v21 = vld [vmem:[%s1 + $0x20] sm:$0xff]
    %v22 = vld [vmem:[%s1 + $0x28] sm:$0xff]
    %v23 = vld [vmem:[%s1 + $0x30] sm:$0xff]
    %v24 = vld [vmem:[%s1 + $0x38] sm:$0xff]
    %vm25 = vcmask 261120
    %v27 = vsel %vm25, %v15, 0
    %v30 = vsel %vm25, %v16, 0
    %32 = vmatprep.subr.mxu0 %v18
    %33 = vmatpush1.msra.mxu0 %v17
    %34 = vmatprep.subr.mxu0 %v20
    %35 = vmatpush1.msra.mxu0 %v19
    %36 = vmatprep.subr.mxu0 %v22
    %37 = vmatpush1.msra.mxu0 %v21
    %38 = vmatprep.subr.mxu0 %v24
    %39 = vmatpush1.msra.mxu0 %v23
    %40 = vmatprep.subr.mxu0 0.0
    %41 = vmatpush1.msra.mxu0 0.0
    %42 = vmatprep.subr.mxu0 0.0
    %43 = vmatpush1.msra.mxu0 0.0
    %44 = vmatprep.subr.mxu0 0.0
    %45 = vmatpush1.msra.mxu0 0.0
    %46 = vmatprep.subr.mxu0 0.0
    %47 = vmatpush1.msra.mxu0 0.0
    %48 = vmatprep.subr.mxu0 0.0
    %49 = vmatpush1.msra.mxu0 0.0
    %50 = vmatprep.subr.mxu0 0.0
    %51 = vmatpush1.msra.mxu0 0.0
    %52 = vmatprep.subr.mxu0 0.0
    %53 = vmatpush1.msra.mxu0 0.0
    %54 = vmatprep.subr.mxu0 0.0
    %55 = vmatpush1.msra.mxu0 0.0
    %56 = vmatprep.subr.mxu0 0.0
    %57 = vmatpush1.msra.mxu0 0.0
    %58 = vmatprep.subr.mxu0 0.0
    %59 = vmatpush1.msra.mxu0 0.0
    %60 = vmatprep.subr.mxu0 0.0
    %61 = vmatpush1.msra.mxu0 0.0
    %62 = vmatprep.subr.mxu0 0.0
    %63 = vmatpush1.msra.mxu0 0.0
    %64 = vmatprep.subr.mxu0 0.0
    %65 = vmatpush1.msra.mxu0 0.0
    %66 = vmatprep.subr.mxu0 0.0
    %67 = vmatpush1.msra.mxu0 0.0
    %68 = vmatprep.subr.mxu0 0.0
    %69 = vmatpush1.msra.mxu0 0.0
    %70 = vmatprep.subr.mxu0 0.0
    %71 = vmatpush1.msra.mxu0 0.0
    %72 = vmatprep.subr.mxu0 0.0
    %73 = vmatpush1.msra.mxu0 0.0
    %74 = vmatprep.subr.mxu0 0.0
    %75 = vmatpush1.msra.mxu0 0.0
    %76 = vmatprep.subr.mxu0 0.0
    %77 = vmatpush1.msra.mxu0 0.0
    %78 = vmatprep.subr.mxu0 0.0
    %79 = vmatpush1.msra.mxu0 0.0
    %80 = vmatprep.subr.mxu0 0.0
    %81 = vmatpush1.msra.mxu0 0.0
    %82 = vmatprep.subr.mxu0 0.0
    %83 = vmatpush1.msra.mxu0 0.0
    %84 = vmatprep.subr.mxu0 0.0
    %85 = vmatpush1.msra.mxu0 0.0
    %86 = vmatprep.subr.mxu0 0.0
    %87 = vmatpush1.msra.mxu0 0.0
    %88 = vmatprep.subr.mxu0 0.0
    %89 = vmatpush1.msra.mxu0 0.0
    %90 = vmatprep.subr.mxu0 0.0
    %91 = vmatpush1.msra.mxu0 0.0
    %92 = vmatprep.subr.mxu0 0.0
    %93 = vmatpush1.msra.mxu0 0.0
    %94 = vmatprep.subr.mxu0 0.0
    %95 = vmatpush1.msra.mxu0 0.0
    %96 = vmatprep.mubr.f32.mxu0 0.0
    %97 = vmatmul.mubr.f32.gmra.mrb[0].mxu0 %v27
    %v98 = vpop.f32.mrb[0].mxu0
    %v99 = vadd.f32 0.0, %v98
    %v100 = vpop.f32.mrb[0].mxu0
    %v101 = vadd.f32 0.0, %v100
    %102 = vmatprep.mubr.f32.mxu0 0.0
    %103 = vmatmul.mubr.f32.gmra.mrb[0].mxu0 %v30
    %v104 = vpop.f32.mrb[0].mxu0
    %v105 = vadd.f32 0.0, %v104
    %v106 = vpop.f32.mrb[0].mxu0
    %v107 = vadd.f32 0.0, %v106
    %108 = vdwg.mxu0
    %v109 = vxor.u32 %v101, 2147483648
    %v110 = vxor.u32 %v107, 2147483648
    %v111 = vmul.f32 %v109, 1.442695
    %v112 = vpow.pop %v111
    %v113 = vmul.f32 %v110, 1.442695
    %v114 = vpow.pop %v113
    %v115 = vadd.f32 %v112, 1.0
    %v116 = vadd.f32 %v114, 1.0
    %v117 = vrcp.pop %v115
    %v118 = vmul.f32 1.0, %v117
    %v119 = vrcp.pop %v116
    %v120 = vmul.f32 1.0, %v119
    %v121 = vmul.f32 %v101, %v118
    %v122 = vmul.f32 %v107, %v120
    %v123 = vmul.f32 %v99, %v121
    %v124 = vmul.f32 %v105, %v122
    %v125 = vld [vmem:[%s2] sm:$0xff]
    %v126 = vld [vmem:[%s2 + $0x8] sm:$0xff]
    %v127 = vld [vmem:[%s2 + $0x10] sm:$0xff]
    %v128 = vld [vmem:[%s2 + $0x18] sm:$0xff]
    %v129 = vld [vmem:[%s2 + $0x20] sm:$0xff]
    %v130 = vld [vmem:[%s2 + $0x28] sm:$0xff]
    %v131 = vld [vmem:[%s2 + $0x30] sm:$0xff]
    %v132 = vld [vmem:[%s2 + $0x38] sm:$0xff]
    %v133 = vld [vmem:[%s2 + $0x40] sm:$0xff]
    %v134 = vld [vmem:[%s2 + $0x48] sm:$0xff]
    %v135 = vld [vmem:[%s2 + $0x50] sm:$0xff]
    %v136 = vld [vmem:[%s2 + $0x58] sm:$0xff]
    %v137 = vld [vmem:[%s2 + $0x60] sm:$0xff]
    %v138 = vld [vmem:[%s2 + $0x68] sm:$0xff]
    %v139 = vld [vmem:[%s2 + $0x70] sm:$0xff]
    %v140 = vld [vmem:[%s2 + $0x78] sm:$0xff]
    %141 = vmatprep.subr.mxu0 0.0
    %142 = vmatpush1.msra.mxu0 %v125
    %143 = vmatprep.subr.mxu0 0.0
    %144 = vmatpush1.msra.mxu0 %v126
    %145 = vmatprep.subr.mxu0 0.0
    %146 = vmatpush1.msra.mxu0 %v127
    %147 = vmatprep.subr.mxu0 0.0
    %148 = vmatpush1.msra.mxu0 %v128
    %149 = vmatprep.subr.mxu0 0.0
    %150 = vmatpush1.msra.mxu0 %v129
    %151 = vmatprep.subr.mxu0 0.0
    %152 = vmatpush1.msra.mxu0 %v130
    %153 = vmatprep.subr.mxu0 0.0
    %154 = vmatpush1.msra.mxu0 %v131
    %155 = vmatprep.subr.mxu0 0.0
    %156 = vmatpush1.msra.mxu0 %v132
    %157 = vmatprep.subr.mxu0 0.0
    %158 = vmatpush1.msra.mxu0 %v133
    %159 = vmatprep.subr.mxu0 0.0
    %160 = vmatpush1.msra.mxu0 %v134
    %161 = vmatprep.subr.mxu0 0.0
    %162 = vmatpush1.msra.mxu0 %v135
    %163 = vmatprep.subr.mxu0 0.0
    %164 = vmatpush1.msra.mxu0 %v136
    %165 = vmatprep.subr.mxu0 0.0
    %166 = vmatpush1.msra.mxu0 %v137
    %167 = vmatprep.subr.mxu0 0.0
    %168 = vmatpush1.msra.mxu0 %v138
    %169 = vmatprep.subr.mxu0 0.0
    %170 = vmatpush1.msra.mxu0 %v139
    %171 = vmatprep.subr.mxu0 0.0
    %172 = vmatpush1.msra.mxu0 %v140
    %173 = vmatprep.subr.mxu0 0.0
    %174 = vmatpush1.msra.mxu0 0.0
    %175 = vmatprep.subr.mxu0 0.0
    %176 = vmatpush1.msra.mxu0 0.0
    %177 = vmatprep.subr.mxu0 0.0
    %178 = vmatpush1.msra.mxu0 0.0
    %179 = vmatprep.subr.mxu0 0.0
    %180 = vmatpush1.msra.mxu0 0.0
    %181 = vmatprep.subr.mxu0 0.0
    %182 = vmatpush1.msra.mxu0 0.0
    %183 = vmatprep.subr.mxu0 0.0
    %184 = vmatpush1.msra.mxu0 0.0
    %185 = vmatprep.subr.mxu0 0.0
    %186 = vmatpush1.msra.mxu0 0.0
    %187 = vmatprep.subr.mxu0 0.0
    %188 = vmatpush1.msra.mxu0 0.0
    %189 = vmatprep.subr.mxu0 0.0
    %190 = vmatpush1.msra.mxu0 0.0
    %191 = vmatprep.subr.mxu0 0.0
    %192 = vmatpush1.msra.mxu0 0.0
    %193 = vmatprep.subr.mxu0 0.0
    %194 = vmatpush1.msra.mxu0 0.0
    %195 = vmatprep.subr.mxu0 0.0
    %196 = vmatpush1.msra.mxu0 0.0
    %197 = vmatprep.subr.mxu0 0.0
    %198 = vmatpush1.msra.mxu0 0.0
    %199 = vmatprep.subr.mxu0 0.0
    %200 = vmatpush1.msra.mxu0 0.0
    %201 = vmatprep.subr.mxu0 0.0
    %202 = vmatpush1.msra.mxu0 0.0
    %203 = vmatprep.subr.mxu0 0.0
    %204 = vmatpush1.msra.mxu0 0.0
    %205 = vmatprep.mubr.f32.mxu0 0.0
    %206 = vmatmul.mubr.f32.gmra.mrb[0].mxu0 %v123
    %v207 = vpop.f32.mrb[0].mxu0
    %v208 = vadd.f32 0.0, %v207
    %v209 = vpop.f32.mrb[0].mxu0
    %210 = vmatprep.mubr.f32.mxu0 0.0
    %211 = vmatmul.mubr.f32.gmra.mrb[0].mxu0 %v124
    %v212 = vpop.f32.mrb[0].mxu0
    %v213 = vadd.f32 0.0, %v212
    %v214 = vpop.f32.mrb[0].mxu0
    %215 = vdwg.mxu0
    %p216 = scmp.eq.s32.totalorder 0, 0
    // Predicated region
    $region14: #{ndl_ffn.1} parent=1 // pred_check
      %p217 = pneg %p216
    $region15: #{ndl_ffn.1} parent=1 // pred_check_branch
      %219 = sbr.rel (%p217) target = $region17
    $region16: #{ndl_ffn.1} parent=1 // pred_region
      %220 = vst.msk [vmem:[#allocation2] sm:$0xff] %vm25, %v208
      %221 = vst.msk [vmem:[#allocation2 + $0x8] sm:$0xff] %vm25, %v213
    $region17: #{ndl_ffn.1} parent=1 // pred_fallthru
      _
    %p222 = scmp.gt.s32.totalorder 0, 0
    // Predicated region
    $region18: #{ndl_ffn.1} parent=1 // pred_check
      %p223 = pneg %p222
    $region19: #{ndl_ffn.1} parent=1 // pred_check_branch
      %225 = sbr.rel (%p223) target = $region21
    $region20: #{ndl_ffn.1} parent=1 // pred_region
      %v226 = vld [vmem:[#allocation2] sm:$0xff]
      %v227 = vld [vmem:[#allocation2 + $0x8] sm:$0xff]
      %v228 = vadd.f32 %v226, %v208
      %v229 = vadd.f32 %v227, %v213
      %230 = vst.msk [vmem:[#allocation2] sm:$0xff] %vm25, %v228
      %231 = vst.msk [vmem:[#allocation2 + $0x8] sm:$0xff] %vm25, %v229
    $region21: #{ndl_ffn.1} parent=1 // pred_fallthru
      _
    // Predicated region
    $region22: #{ndl_ffn.1} parent=1 // pred_check
      %p232 = pneg %p216
    $region23: #{ndl_ffn.1} parent=1 // pred_check_branch
      %234 = sbr.rel (%p232) target = $region25
    $region24: #{ndl_ffn.1} parent=1 // pred_region
      %v235 = vld [vmem:[#allocation2] sm:$0xff]
      %v236 = vld [vmem:[#allocation2 + $0x8] sm:$0xff]
      %237 = vst.msk [vmem:[#allocation3] sm:$0xff] %vm25, %v235
      %238 = vst.msk [vmem:[#allocation3 + $0x8] sm:$0xff] %vm25, %v236
    $region25: #{ndl_ffn.1} parent=1 // pred_fallthru
      _
    // Predicated region
    $region26: #{ndl_ffn.1} parent=1 // pred_check
      _
    $region27: #{ndl_ffn.1} parent=1 // pred_check_branch
      %240 = sbr.rel (0) target = $region29
    $region28: #{ndl_ffn.1} parent=1 // pred_region
      %s242 = ssub.s32 256, 256
      %243 = vsyncadd [#allocation4], %s242
      %s244 = sshll.u32 [#allocation3], 4
      %s245 = int_to_ptr.vmem [resolvable:$true] %s244
      %250 = dma.vmem_to_hbm [thread:$0]  %s245, 256, %s3, [#allocation4], 128, 128, 8
    $region29: #{ndl_ffn.1} parent=1 // pred_fallthru
      _
    // Predicated region
    $region30: #{ndl_ffn.1} parent=1 // pred_check
      _
    $region31: #{ndl_ffn.1} parent=1 // pred_check_branch
      %252 = sbr.rel (0) target = $region33
    $region32: #{ndl_ffn.1} parent=1 // pred_region
      %253 = dma.done [#allocation4], 256
    $region33: #{ndl_ffn.1} parent=1 // pred_fallthru
      _
    %254 = vsyncpa [#allocation4], 1

</llo_original>
